<compile_context>
chip_gen: v6e
topology: v6e:2x2x1
jax: 0.10.0
libtpu: 0.0.40
codegen_flags: <defaults>
</compile_context>

<pallas_src>
import jax
import jax.numpy as jnp
from jax import lax
from jax.experimental import pallas as pl
from jax.experimental.pallas import tpu as pltpu

# -------- Module hyperparameters (from Block1.__init__) --------
C_IN, C_OUT = 1, 64
KH = KW = 7
KK = C_IN * KH * KW          # 49
STRIDE = 2
PAD = 3
# LocalResponseNorm(size=2) PyTorch defaults:
LRN_SIZE = 2
LRN_ALPHA = 1e-4
LRN_BETA = 0.75
LRN_K = 1.0

PACK = 2                     # conv-output rows packed per kernel row
PK = PACK * KK               # 98  (packed contraction dim)
PC = PACK * C_OUT            # 128 (packed, lane-dense output channels)
DEFAULT_TILE_R = 1024        # packed rows per grid step (= 2048 output pixels)


def _round_up(a, m):
    return (a + m - 1) // m * m


def block1_kernel(p_ref, w_ref, b_ref, o_ref):
    # p_ref: (TILE_R, 98)  bf16 packed patches (2 conv rows per kernel row)
    # w_ref: (98, 128)     bf16 block-diagonal packed conv weights
    # b_ref: (1, 128)      f32  bias tiled twice
    # o_ref: (TILE_R, 128) f32  packed output (lane-dense, unmasked stores)
    y = jnp.dot(p_ref[...], w_ref[...], preferred_element_type=jnp.float32)
    y = y + b_ref[...]                           # bias (broadcast over rows)
    y = jnp.maximum(y, 0.0)                      # ReLU

    # LocalResponseNorm(size=2) across channels.  Lanes hold two independent
    # conv rows: [row0 ch0..63 | row1 ch0..63]; channel = lane & 63.
    #   div[c] = (y[c-1]^2 + y[c]^2) / 2, with y[-1] = 0 (zero padding)
    rolled = pltpu.roll(y, shift=1, axis=1)      # rolled[:, l] = y[:, l-1]
    lane = lax.broadcasted_iota(jnp.int32, y.shape, 1)
    y_prev = jnp.where((lane & (C_OUT - 1)) == 0, 0.0, rolled)
    div = (y_prev * y_prev + y * y) * (1.0 / LRN_SIZE)
    t = LRN_K + LRN_ALPHA * div
    # t**-0.75 = rsqrt(t) * rsqrt(sqrt(t)): EUP slots instead of pow + divide.
    o_ref[...] = y * (lax.rsqrt(t) * lax.rsqrt(jnp.sqrt(t)))


def im2col(x_nchw, kh, kw, stride, pad):
    """(N, C, H, W) -> (N*OH*OW, C*kh*kw) patch matrix (plain-JAX glue)."""
    N, C, H, W = x_nchw.shape
    OH = (H + 2 * pad - kh) // stride + 1
    OW = (W + 2 * pad - kw) // stride + 1
    xp = jnp.pad(x_nchw, ((0, 0), (0, 0), (pad, pad), (pad, pad)))
    rows = jnp.arange(OH)[:, None] * stride + jnp.arange(kh)[None, :]   # (OH, kh)
    cols = jnp.arange(OW)[:, None] * stride + jnp.arange(kw)[None, :]   # (OW, kw)
    patches = xp[:, :, rows[:, :, None, None], cols[None, None, :, :]]  # (N,C,OH,kh,OW,kw)
    patches = patches.transpose(0, 2, 4, 1, 3, 5).reshape(N * OH * OW, C * kh * kw)
    return patches, OH, OW


@jax.jit
def block1_forward(x_nchw, weight, bias):
    """x: (N,1,H,W) f32; weight: (64,1,7,7) f32; bias: (64,) f32 -> (N,64,OH,OW) f32."""
    N = x_nchw.shape[0]
    # bf16 patch feed: cast before the gather so the im2col matrix is only
    # ever materialized at half width.
    # TODO(synk): full in-kernel patch assembly from a padded row-band would
    # remove this HBM round-trip entirely (needs strided lane gathers).
    patches, OH, OW = im2col(x_nchw.astype(jnp.bfloat16), KH, KW, STRIDE, PAD)
    M = N * OH * OW

    # Pack PACK=2 conv rows per kernel row -> lane-dense (..., 128) output.
    mh_raw = (M + PACK - 1) // PACK
    tile_r = min(DEFAULT_TILE_R, _round_up(mh_raw, 16))
    mh = _round_up(mh_raw, tile_r)
    mp = PACK * mh
    patches = jnp.pad(patches, ((0, mp - M), (0, 0)))
    patches2 = patches.reshape(mh, PK)           # row-major: free in HBM

    # Block-diagonal packed weight: out2[r, 64p+c] = sum_k p2[r, 49p+k]*w[k,c]
    w2d = weight.reshape(C_OUT, KK).T            # (49, 64), (C,KH,KW)-major K
    w_packed = jnp.zeros((PK, PC), jnp.float32)
    w_packed = w_packed.at[:KK, :C_OUT].set(w2d).at[KK:, C_OUT:].set(w2d)
    w_packed = w_packed.astype(jnp.bfloat16)
    b_packed = jnp.concatenate([bias, bias]).reshape(1, PC).astype(jnp.float32)

    grid = (mh // tile_r,)
    cost = pl.CostEstimate(
        flops=2 * mp * KK * C_OUT,
        transcendentals=3 * mp * C_OUT,
        bytes_accessed=mh * PK * 2 + mh * PC * 4 + PK * PC * 2 + PC * 4,
    )

    out2 = pl.pallas_call(
        block1_kernel,
        out_shape=jax.ShapeDtypeStruct((mh, PC), jnp.float32),
        grid=grid,
        in_specs=[
            pl.BlockSpec((tile_r, PK), lambda i: (i, 0)),   # patches: tiled rows
            pl.BlockSpec((PK, PC), lambda i: (0, 0)),       # weights: resident
            pl.BlockSpec((1, PC), lambda i: (0, 0)),        # bias:    resident
        ],
        out_specs=pl.BlockSpec((tile_r, PC), lambda i: (i, 0)),
        compiler_params=pltpu.CompilerParams(
            dimension_semantics=("parallel",)),             # megacore on v7x
        cost_estimate=cost,
    )(patches2, w_packed, b_packed)

    # (mh, 128) -> (mp, 64) -> drop pad rows -> NHWC -> NCHW (PyTorch layout).
    out = out2.reshape(mp, C_OUT)[:M].reshape(N, OH, OW, C_OUT)
    # NOTE: if the downstream consumer accepts NHWC, return `out` directly and
    # skip this transpose (it is a full extra HBM pass on a memory-bound op).
    return out.transpose(0, 3, 1, 2)


def block1_reference(x_nchw, weight, bias):
    """Plain-JAX reference matching PyTorch semantics (for validation)."""
    y = lax.conv_general_dilated(
        x_nchw, weight, window_strides=(STRIDE, STRIDE),
        padding=((PAD, PAD), (PAD, PAD)),
        dimension_numbers=("NCHW", "OIHW", "NCHW"))
    y = y + bias[None, :, None, None]
    y = jnp.maximum(y, 0.0)
    y_sq = y * y
    y_prev_sq = jnp.pad(y_sq, ((0, 0), (1, 0), (0, 0), (0, 0)))[:, :-1]
    div = (y_prev_sq + y_sq) / LRN_SIZE
    return y / jnp.power(LRN_K + LRN_ALPHA * div, LRN_BETA)


if __name__ == "__main__":
    key = jax.random.PRNGKey(0)
    k_x, k_w, k_b = jax.random.split(key, 3)

    # Small shapes consistent with the module: batch=2, 1 input channel, 16x16.
    x = jax.random.normal(k_x, (2, 1, 16, 16), dtype=jnp.float32)

    # Deterministic parameter init (PyTorch-Conv2d-like uniform bound).
    fan_in = C_IN * KH * KW
    bound = 1.0 / (fan_in ** 0.5)
    weight = jax.random.uniform(k_w, (C_OUT, C_IN, KH, KW),
                                minval=-bound, maxval=bound, dtype=jnp.float32)
    bias = jax.random.uniform(k_b, (C_OUT,),
                              minval=-bound, maxval=bound, dtype=jnp.float32)

    out = jax.block_until_ready(block1_forward(x, weight, bias))
    assert out.shape == (2, 64, 8, 8), out.shape

    # Strict check: reference fed the same bf16-rounded inputs the kernel sees
    # (isolates kernel correctness from the deliberate bf16 bandwidth trade).
    ref_bf16 = block1_reference(
        x.astype(jnp.bfloat16).astype(jnp.float32),
        weight.astype(jnp.bfloat16).astype(jnp.float32), bias)
    ref_bf16 = jax.block_until_ready(ref_bf16)
    err_strict = float(jnp.max(jnp.abs(out - ref_bf16)))
    assert jnp.allclose(out, ref_bf16, atol=1e-4, rtol=1e-4), err_strict

    # Fidelity check vs. the pure-f32 PyTorch-semantics reference; tolerance
    # accounts for the bf16 patch/weight feed (f32 accumulation in the MXU).
    ref_f32 = jax.block_until_ready(block1_reference(x, weight, bias))
    err_f32 = float(jnp.max(jnp.abs(out - ref_f32)))
    assert jnp.allclose(out, ref_f32, atol=3e-2, rtol=3e-2), err_f32

    print("KERNEL_OK")
</pallas_src>

<mosaic_0001>
module attributes {stable_mosaic.version = 11 : i64} {
  func.func @block1_kernel(%arg0: i32, %arg1: memref<64x98xbf16, #tpu.memory_space<vmem>>, %arg2: memref<98x128xbf16, #tpu.memory_space<vmem>>, %arg3: memref<1x128xf32, #tpu.memory_space<vmem>>, %arg4: memref<64x128xf32, #tpu.memory_space<vmem>>) attributes {dimension_semantics = [#tpu.dimension_semantics<parallel>], iteration_bounds = array<i64: 1>, scalar_prefetch = 0 : i64, scratch_operands = 0 : i64, tpu.core_type = #tpu.core_type<tc>, window_params = [{transform_indices = @transform_0, window_bounds = array<i64: 64, 98>}, {pipeline_mode = #tpu.pipeline_mode<synchronous>, transform_indices = @transform_1, window_bounds = array<i64: 98, 128>}, {pipeline_mode = #tpu.pipeline_mode<synchronous>, transform_indices = @transform_2, window_bounds = array<i64: 1, 128>}, {transform_indices = @transform_3, window_bounds = array<i64: 64, 128>}]} {
    %c0 = arith.constant 0 : index
    %c0_0 = arith.constant 0 : index
    %0 = vector.load %arg1[%c0, %c0_0] : memref<64x98xbf16, #tpu.memory_space<vmem>>, vector<64x98xbf16>
    %c0_1 = arith.constant 0 : index
    %c0_2 = arith.constant 0 : index
    %1 = vector.load %arg2[%c0_1, %c0_2] : memref<98x128xbf16, #tpu.memory_space<vmem>>, vector<98x128xbf16>
    %cst = arith.constant dense<0.000000e+00> : vector<64x128xf32>
    %2 = tpu.matmul %0, %1, %cst {dimension_numbers = #tpu.dot_dimension_numbers<[1], [0], [0], [1], [0, 0, 1, 1], [], []>} : vector<64x98xbf16>, vector<98x128xbf16>, vector<64x128xf32> -> vector<64x128xf32>
    %c0_3 = arith.constant 0 : index
    %c0_4 = arith.constant 0 : index
    %3 = vector.load %arg3[%c0_3, %c0_4] : memref<1x128xf32, #tpu.memory_space<vmem>>, vector<1x128xf32>
    %4 = vector.broadcast %3 : vector<1x128xf32> to vector<64x128xf32>
    %5 = arith.addf %2, %4 : vector<64x128xf32>
    %cst_5 = arith.constant 0.000000e+00 : f32
    %6 = vector.broadcast %cst_5 : f32 to vector<64x128xf32>
    %7 = arith.maximumf %5, %6 : vector<64x128xf32>
    %c1_i32 = arith.constant 1 : i32
    %8 = tpu.dynamic_rotate %7 by %c1_i32 dim 1 : vector<64x128xf32>, i32 -> vector<64x128xf32>
    %9 = tpu.iota {dimensions = array<i32: 1>} : vector<64x128xi32>
    %c63_i32 = arith.constant 63 : i32
    %10 = vector.broadcast %c63_i32 : i32 to vector<64x128xi32>
    %11 = arith.andi %9, %10 : vector<64x128xi32>
    %c0_i32 = arith.constant 0 : i32
    %12 = vector.broadcast %c0_i32 : i32 to vector<64x128xi32>
    %13 = arith.cmpi eq, %11, %12 : vector<64x128xi32>
    %cst_6 = arith.constant 0.000000e+00 : f32
    %14 = vector.broadcast %cst_6 : f32 to vector<64x128xf32>
    %15 = arith.select %13, %14, %8 : vector<64x128xi1>, vector<64x128xf32>
    %16 = arith.mulf %15, %15 : vector<64x128xf32>
    %17 = arith.mulf %7, %7 : vector<64x128xf32>
    %18 = arith.addf %16, %17 : vector<64x128xf32>
    %cst_7 = arith.constant 5.000000e-01 : f32
    %19 = vector.broadcast %cst_7 : f32 to vector<64x128xf32>
    %20 = arith.mulf %18, %19 : vector<64x128xf32>
    %cst_8 = arith.constant 9.99999974E-5 : f32
    %21 = vector.broadcast %cst_8 : f32 to vector<64x128xf32>
    %22 = arith.mulf %21, %20 : vector<64x128xf32>
    %cst_9 = arith.constant 1.000000e+00 : f32
    %23 = vector.broadcast %cst_9 : f32 to vector<64x128xf32>
    %24 = arith.addf %23, %22 : vector<64x128xf32>
    %25 = math.rsqrt %24 : vector<64x128xf32>
    %26 = math.sqrt %24 : vector<64x128xf32>
    %27 = math.rsqrt %26 : vector<64x128xf32>
    %28 = arith.mulf %25, %27 : vector<64x128xf32>
    %29 = arith.mulf %7, %28 : vector<64x128xf32>
    %c0_10 = arith.constant 0 : index
    %c0_11 = arith.constant 0 : index
    %30 = vector.load %arg4[%c0_10, %c0_11] : memref<64x128xf32, #tpu.memory_space<vmem>>, vector<64x128xf32>
    tpu.vector_store %arg4[%c0_10, %c0_11], %29 {strides = array<i32>} : memref<64x128xf32, #tpu.memory_space<vmem>>, vector<64x128xf32>,
    return
  }
  func.func @transform_0(%arg0: i32) -> (i32, i32) {
    %c0_i32 = arith.constant 0 : i32
    %c0_i32_0 = arith.constant 0 : i32
    return %arg0, %c0_i32 : i32, i32
  }
  func.func @transform_1(%arg0: i32) -> (i32, i32) {
    %c0_i32 = arith.constant 0 : i32
    %c0_i32_0 = arith.constant 0 : i32
    %c0_i32_1 = arith.constant 0 : i32
    return %c0_i32, %c0_i32_0 : i32, i32
  }
  func.func @transform_2(%arg0: i32) -> (i32, i32) {
    %c0_i32 = arith.constant 0 : i32
    %c0_i32_0 = arith.constant 0 : i32
    %c0_i32_1 = arith.constant 0 : i32
    return %c0_i32, %c0_i32_0 : i32, i32
  }
  func.func @transform_3(%arg0: i32) -> (i32, i32) {
    %c0_i32 = arith.constant 0 : i32
    %c0_i32_0 = arith.constant 0 : i32
    return %arg0, %c0_i32 : i32, i32
  }
}

</mosaic_0001>

<llo_original>
// kernel: block1_forward.1
$region0: #{block1_forward.1}
  #allocation0 [shape = 'u32[]', space=smem, size = 0x4, offset = 0x4, fixed_abs, tag = 'smem constant byte address 0x4 - core index']
  #allocation1 [shape = 'u32[144,128]{1,0:T(1,128)}', space=vmem, size = 0x12000, scoped, tag = 'internal scratch']
  %s0 = inlined_call_operand.vmem [shape: bf16[64,98], index: 0, kind: input, shape index: {}]
  %s1 = inlined_call_operand.vmem [shape: bf16[98,128], index: 1, kind: input, shape index: {}]
  %s2 = inlined_call_operand.vmem [shape: f32[1,128], index: 2, kind: input, shape index: {}]
  %s3 = inlined_call_operand.vmem [shape: f32[64,128], index: 3, kind: output, shape index: {}]
  %s4 = sld [smem:[#allocation0]]
  $region22: #{block1_forward.1} parent=0
    _
  %s6 = ssub.s32 1, %s4
  %s7 = scalar_select 0, %s6, %s4
  // Predicated region
  $region2: #{block1_forward.1} parent=0 // pred_check
    _
  $region3: #{block1_forward.1} parent=0 // pred_check_branch
    %9 = sbr.rel (0) target = $region5
  $region4: #{block1_forward.1} parent=0 // pred_region
    _
  $region5: #{block1_forward.1} parent=0 // pred_fallthru
    _
  // Predicated region
  $region6: #{block1_forward.1} parent=0 // pred_check
    _
  $region7: #{block1_forward.1} parent=0 // pred_check_branch
    %11 = sbr.rel (0) target = $region9
  $region8: #{block1_forward.1} parent=0 // pred_region
    _
  $region9: #{block1_forward.1} parent=0 // pred_fallthru
    _
  // Predicated region
  $region10: #{block1_forward.1} parent=0 // pred_check
    _
  $region11: #{block1_forward.1} parent=0 // pred_check_branch
    %13 = sbr.rel (0) target = $region13
  $region12: #{block1_forward.1} parent=0 // pred_region
    _
  $region13: #{block1_forward.1} parent=0 // pred_fallthru
    _
  %v15 = vld [vmem:[%s0] sm:$0xf]
  %v16 = vld [vmem:[%s0 + $0x4] sm:$0xf]
  %v17 = vld [vmem:[%s0 + $0x8] sm:$0xf]
  %v18 = vld [vmem:[%s0 + $0xc] sm:$0xf]
  %v19 = vld [vmem:[%s0 + $0x10] sm:$0xf]
  %v20 = vld [vmem:[%s0 + $0x14] sm:$0xf]
  %v21 = vld [vmem:[%s0 + $0x18] sm:$0xf]
  %v22 = vld [vmem:[%s0 + $0x1c] sm:$0xf]
  %v23 = vld [vmem:[%s1] sm:$0xf]
  %v24 = vld [vmem:[%s1 + $0x4] sm:$0xf]
  %v25 = vld [vmem:[%s1 + $0x8] sm:$0xf]
  %v26 = vld [vmem:[%s1 + $0xc] sm:$0xf]
  %v27 = vld [vmem:[%s1 + $0x10] sm:$0xf]
  %v28 = vld [vmem:[%s1 + $0x14] sm:$0xf]
  %v29 = vld [vmem:[%s1 + $0x18] sm:$0xf]
  %v30 = vld [vmem:[%s1 + $0x1c] sm:$0xf]
  %v31 = vld [vmem:[%s1 + $0x20] sm:$0xf]
  %v32 = vld [vmem:[%s1 + $0x24] sm:$0xf]
  %v33 = vld [vmem:[%s1 + $0x28] sm:$0xf]
  %v34 = vld [vmem:[%s1 + $0x2c] sm:$0xf]
  %v35 = vld [vmem:[%s1 + $0x30] sm:$0x1]
  %v36 = vld [vmem:[%s2] sm:$0x1]
  %v38 = vlaneseq
  %v39 = vshrl.u32 %v38, 7
  %v40 = vsub.s32 0, %v39
  %v41 = vrot.slane %v36, %v40
  %v51 = vunpack.c.l.b16 %v15
  %v52 = vunpack.c.l.b16 %v16
  %v53 = vunpack.c.l.b16 %v17
  %v54 = vunpack.c.l.b16 %v18
  %v55 = vunpack.c.l.b16 %v19
  %v56 = vunpack.c.l.b16 %v20
  %v57 = vunpack.c.l.b16 %v21
  %v58 = vunpack.c.l.b16 %v22
  %v59 = vpack.c.b16 %v52, %v51
  %v60 = vpack.c.b16 %v54, %v53
  %v61 = vpack.c.b16 %v56, %v55
  %v62 = vpack.c.b16 %v58, %v57
  %v76 = vunpack.c.l.b16 %v23
  %v77 = vunpack.c.l.b16 %v24
  %v78 = vunpack.c.l.b16 %v25
  %v79 = vunpack.c.l.b16 %v26
  %v80 = vunpack.c.l.b16 %v27
  %v81 = vunpack.c.l.b16 %v28
  %v82 = vunpack.c.l.b16 %v29
  %v83 = vunpack.c.l.b16 %v30
  %v84 = vunpack.c.l.b16 %v31
  %v85 = vunpack.c.l.b16 %v32
  %v86 = vunpack.c.l.b16 %v33
  %v87 = vunpack.c.l.b16 %v34
  %v88 = vunpack.c.l.b16 %v35
  %v89 = vpack.c.b16 %v77, %v76
  %v90 = vpack.c.b16 %v79, %v78
  %v91 = vpack.c.b16 %v81, %v80
  %v92 = vpack.c.b16 %v83, %v82
  %v93 = vpack.c.b16 %v85, %v84
  %v94 = vpack.c.b16 %v87, %v86
  %v95 = vpack.c.b16 %v88, %v88
  %vm102 = vcmask 801792
  %v104 = vsel %vm102, %v59, 0
  %v107 = vsel %vm102, %v60, 0
  %v110 = vsel %vm102, %v61, 0
  %v113 = vsel %vm102, %v62, 0
  %vm115 = vcmask 1040384
  %v117 = vsel %vm115, %v95, 0
  %119 = vmatprep.subr.bf16.mxu0 0
  %120 = vmatpush1.bf16.msra.mxu0 0
  %121 = vmatprep.subr.bf16.mxu0 0
  %122 = vmatpush1.bf16.msra.mxu0 %v117
  %123 = vmatprep.subr.bf16.mxu0 0
  %124 = vmatpush1.bf16.msra.mxu0 %v94
  %125 = vmatprep.subr.bf16.mxu0 0
  %126 = vmatpush1.bf16.msra.mxu0 %v93
  %127 = vmatprep.subr.bf16.mxu0 0
  %128 = vmatpush1.bf16.msra.mxu0 %v92
  %129 = vmatprep.subr.bf16.mxu0 0
  %130 = vmatpush1.bf16.msra.mxu0 %v91
  %131 = vmatprep.subr.bf16.mxu0 0
  %132 = vmatpush1.bf16.msra.mxu0 %v90
  %133 = vmatprep.subr.bf16.mxu0 0
  %134 = vmatpush1.bf16.msra.mxu0 %v89
  %135 = vmatprep.subr.bf16.mxu0 0
  %136 = vmatpush2.bf16.msra.mxu0 0
  %137 = vmatprep.subr.bf16.mxu0 0
  %138 = vmatpush2.bf16.msra.mxu0 0
  %139 = vmatprep.subr.bf16.mxu0 0
  %140 = vmatpush2.bf16.msra.mxu0 0
  %141 = vmatprep.subr.bf16.mxu0 0
  %142 = vmatpush2.bf16.msra.mxu0 0
  %143 = vmatprep.subr.bf16.mxu0 0
  %144 = vmatpush2.bf16.msra.mxu0 0
  %145 = vmatprep.subr.bf16.mxu0 0
  %146 = vmatpush2.bf16.msra.mxu0 0
  %147 = vmatprep.subr.bf16.mxu0 0
  %148 = vmatpush2.bf16.msra.mxu0 0
  %149 = vmatprep.subr.bf16.mxu0 0
  %150 = vmatpush2.bf16.msra.mxu0 0
  %151 = vmatprep.mubr.bf16.mxu0 0
  %152 = vmatmul.mubr.bf16.gmra.mxu0 %v104
  %v153 = vpop.f32.mrf.mxu0
  %v154 = vadd.f32 %v41, %v153
  %v155 = vpop.f32.mrf.mxu0
  %v156 = vpop.f32.mrf.mxu0
  %v157 = vadd.f32 %v41, %v156
  %v158 = vpop.f32.mrf.mxu0
  %159 = vmatprep.mubr.bf16.mxu0 0
  %160 = vmatmul.mubr.bf16.gmra.mxu0 %v107
  %v161 = vpop.f32.mrf.mxu0
  %v162 = vadd.f32 %v41, %v161
  %v163 = vpop.f32.mrf.mxu0
  %v164 = vpop.f32.mrf.mxu0
  %v165 = vadd.f32 %v41, %v164
  %v166 = vpop.f32.mrf.mxu0
  %167 = vmatprep.mubr.bf16.mxu0 0
  %168 = vmatmul.mubr.bf16.gmra.mxu0 %v110
  %v169 = vpop.f32.mrf.mxu0
  %v170 = vadd.f32 %v41, %v169
  %v171 = vpop.f32.mrf.mxu0
  %v172 = vpop.f32.mrf.mxu0
  %v173 = vadd.f32 %v41, %v172
  %v174 = vpop.f32.mrf.mxu0
  %175 = vmatprep.mubr.bf16.mxu0 0
  %176 = vmatmul.mubr.bf16.gmra.mxu0 %v113
  %v177 = vpop.f32.mrf.mxu0
  %v178 = vadd.f32 %v41, %v177
  %v179 = vpop.f32.mrf.mxu0
  %v180 = vpop.f32.mrf.mxu0
  %v181 = vadd.f32 %v41, %v180
  %v182 = vpop.f32.mrf.mxu0
  %183 = vdwg.mxu0
  %v184 = vmax.f32 %v154, 0.0
  %v185 = vmax.f32 %v157, 0.0
  %v186 = vmax.f32 %v162, 0.0
  %v187 = vmax.f32 %v165, 0.0
  %v188 = vmax.f32 %v170, 0.0
  %v189 = vmax.f32 %v173, 0.0
  %v190 = vmax.f32 %v178, 0.0
  %v191 = vmax.f32 %v181, 0.0
  %192 = vrot.lane.b32.xlu0 %v184, 1
  %v193 = vpop.permute.xlu0 %192
  %194 = vrot.lane.b32.xlu0 %v185, 1
  %v195 = vpop.permute.xlu0 %194
  %196 = vrot.lane.b32.xlu0 %v186, 1
  %v197 = vpop.permute.xlu0 %196
  %198 = vrot.lane.b32.xlu0 %v187, 1
  %v199 = vpop.permute.xlu0 %198
  %200 = vrot.lane.b32.xlu0 %v188, 1
  %v201 = vpop.permute.xlu0 %200
  %202 = vrot.lane.b32.xlu0 %v189, 1
  %v203 = vpop.permute.xlu0 %202
  %204 = vrot.lane.b32.xlu0 %v190, 1
  %v205 = vpop.permute.xlu0 %204
  %206 = vrot.lane.b32.xlu0 %v191, 1
  %v207 = vpop.permute.xlu0 %206
  %v208 = vlaneseq
  %v209 = vand.u32 %v208, 127
  %v210 = vand.u32 %v209, 63
  %vm211 = vcmp.eq.s32.totalorder %v210, 0
  %v212 = vsel %vm211, 0.0, %v193
  %v213 = vsel %vm211, 0.0, %v195
  %v214 = vsel %vm211, 0.0, %v197
  %v215 = vsel %vm211, 0.0, %v199
  %v216 = vsel %vm211, 0.0, %v201
  %v217 = vsel %vm211, 0.0, %v203
  %v218 = vsel %vm211, 0.0, %v205
  %v219 = vsel %vm211, 0.0, %v207
  %v220 = vmul.f32 %v212, %v212
  %v221 = vmul.f32 %v213, %v213
  %v222 = vmul.f32 %v214, %v214
  %v223 = vmul.f32 %v215, %v215
  %v224 = vmul.f32 %v216, %v216
  %v225 = vmul.f32 %v217, %v217
  %v226 = vmul.f32 %v218, %v218
  %v227 = vmul.f32 %v219, %v219
  %v228 = vmul.f32 %v184, %v184
  %v229 = vmul.f32 %v185, %v185
  %v230 = vmul.f32 %v186, %v186
  %v231 = vmul.f32 %v187, %v187
  %v232 = vmul.f32 %v188, %v188
  %v233 = vmul.f32 %v189, %v189
  %v234 = vmul.f32 %v190, %v190
  %v235 = vmul.f32 %v191, %v191
  %v236 = vadd.f32 %v220, %v228
  %v237 = vadd.f32 %v221, %v229
  %v238 = vadd.f32 %v222, %v230
  %v239 = vadd.f32 %v223, %v231
  %v240 = vadd.f32 %v224, %v232
  %v241 = vadd.f32 %v225, %v233
  %v242 = vadd.f32 %v226, %v234
  %v243 = vadd.f32 %v227, %v235
  %v244 = vmul.f32 %v236, 0.5
  %v245 = vmul.f32 %v237, 0.5
  %v246 = vmul.f32 %v238, 0.5
  %v247 = vmul.f32 %v239, 0.5
  %v248 = vmul.f32 %v240, 0.5
  %v249 = vmul.f32 %v241, 0.5
  %v250 = vmul.f32 %v242, 0.5
  %v251 = vmul.f32 %v243, 0.5
  %v252 = vmul.f32 %v244, 0.0001
  %v253 = vmul.f32 %v245, 0.0001
  %v254 = vmul.f32 %v246, 0.0001
  %v255 = vmul.f32 %v247, 0.0001
  %v256 = vmul.f32 %v248, 0.0001
  %v257 = vmul.f32 %v249, 0.0001
  %v258 = vmul.f32 %v250, 0.0001
  %v259 = vmul.f32 %v251, 0.0001
  %v260 = vadd.f32 %v252, 1.0
  %v261 = vadd.f32 %v253, 1.0
  %v262 = vadd.f32 %v254, 1.0
  %v263 = vadd.f32 %v255, 1.0
  %v264 = vadd.f32 %v256, 1.0
  %v265 = vadd.f32 %v257, 1.0
  %v266 = vadd.f32 %v258, 1.0
  %v267 = vadd.f32 %v259, 1.0
  %v268 = vrsqrt.pop %v260
  %v269 = vrsqrt.pop %v261
  %v270 = vrsqrt.pop %v262
  %v271 = vrsqrt.pop %v263
  %v272 = vrsqrt.pop %v264
  %v273 = vrsqrt.pop %v265
  %v274 = vrsqrt.pop %v266
  %v275 = vrsqrt.pop %v267
  %v276 = vrsqrt.pop %v260
  %v277 = vmul.f32 %v260, %v276
  %vm278 = vcmp.eq.f32.partialorder %v260, inf
  %v279 = vsel %vm278, %v260, %v277
  %vm280 = vcmp.eq.f32.partialorder %v260, 0.0
  %v281 = vand.u32 %v260, 2147483648
  %v282 = vsel %vm280, %v281, %v279
  %v283 = vrsqrt.pop %v261
  %v284 = vmul.f32 %v261, %v283
  %vm285 = vcmp.eq.f32.partialorder %v261, inf
  %v286 = vsel %vm285, %v261, %v284
  %vm287 = vcmp.eq.f32.partialorder %v261, 0.0
  %v288 = vand.u32 %v261, 2147483648
  %v289 = vsel %vm287, %v288, %v286
  %v290 = vrsqrt.pop %v262
  %v291 = vmul.f32 %v262, %v290
  %vm292 = vcmp.eq.f32.partialorder %v262, inf
  %v293 = vsel %vm292, %v262, %v291
  %vm294 = vcmp.eq.f32.partialorder %v262, 0.0
  %v295 = vand.u32 %v262, 2147483648
  %v296 = vsel %vm294, %v295, %v293
  %v297 = vrsqrt.pop %v263
  %v298 = vmul.f32 %v263, %v297
  %vm299 = vcmp.eq.f32.partialorder %v263, inf
  %v300 = vsel %vm299, %v263, %v298
  %vm301 = vcmp.eq.f32.partialorder %v263, 0.0
  %v302 = vand.u32 %v263, 2147483648
  %v303 = vsel %vm301, %v302, %v300
  %v304 = vrsqrt.pop %v264
  %v305 = vmul.f32 %v264, %v304
  %vm306 = vcmp.eq.f32.partialorder %v264, inf
  %v307 = vsel %vm306, %v264, %v305
  %vm308 = vcmp.eq.f32.partialorder %v264, 0.0
  %v309 = vand.u32 %v264, 2147483648
  %v310 = vsel %vm308, %v309, %v307
  %v311 = vrsqrt.pop %v265
  %v312 = vmul.f32 %v265, %v311
  %vm313 = vcmp.eq.f32.partialorder %v265, inf
  %v314 = vsel %vm313, %v265, %v312
  %vm315 = vcmp.eq.f32.partialorder %v265, 0.0
  %v316 = vand.u32 %v265, 2147483648
  %v317 = vsel %vm315, %v316, %v314
  %v318 = vrsqrt.pop %v266
  %v319 = vmul.f32 %v266, %v318
  %vm320 = vcmp.eq.f32.partialorder %v266, inf
  %v321 = vsel %vm320, %v266, %v319
  %vm322 = vcmp.eq.f32.partialorder %v266, 0.0
  %v323 = vand.u32 %v266, 2147483648
  %v324 = vsel %vm322, %v323, %v321
  %v325 = vrsqrt.pop %v267
  %v326 = vmul.f32 %v267, %v325
  %vm327 = vcmp.eq.f32.partialorder %v267, inf
  %v328 = vsel %vm327, %v267, %v326
  %vm329 = vcmp.eq.f32.partialorder %v267, 0.0
  %v330 = vand.u32 %v267, 2147483648
  %v331 = vsel %vm329, %v330, %v328
  %v332 = vrsqrt.pop %v282
  %v333 = vrsqrt.pop %v289
  %v334 = vrsqrt.pop %v296
  %v335 = vrsqrt.pop %v303
  %v336 = vrsqrt.pop %v310
  %v337 = vrsqrt.pop %v317
  %v338 = vrsqrt.pop %v324
  %v339 = vrsqrt.pop %v331
  %v340 = vmul.f32 %v268, %v332
  %v341 = vmul.f32 %v269, %v333
  %v342 = vmul.f32 %v270, %v334
  %v343 = vmul.f32 %v271, %v335
  %v344 = vmul.f32 %v272, %v336
  %v345 = vmul.f32 %v273, %v337
  %v346 = vmul.f32 %v274, %v338
  %v347 = vmul.f32 %v275, %v339
  %v348 = vmul.f32 %v184, %v340
  %v349 = vmul.f32 %v185, %v341
  %v350 = vmul.f32 %v186, %v342
  %v351 = vmul.f32 %v187, %v343
  %v352 = vmul.f32 %v188, %v344
  %v353 = vmul.f32 %v189, %v345
  %v354 = vmul.f32 %v190, %v346
  %v355 = vmul.f32 %v191, %v347
  %356 = vst [vmem:[%s3] sm:$0xff] %v348
  %357 = vst [vmem:[%s3 + $0x8] sm:$0xff] %v349
  %358 = vst [vmem:[%s3 + $0x10] sm:$0xff] %v350
  %359 = vst [vmem:[%s3 + $0x18] sm:$0xff] %v351
  %360 = vst [vmem:[%s3 + $0x20] sm:$0xff] %v352
  %361 = vst [vmem:[%s3 + $0x28] sm:$0xff] %v353
  %362 = vst [vmem:[%s3 + $0x30] sm:$0xff] %v354
  %363 = vst [vmem:[%s3 + $0x38] sm:$0xff] %v355
  // Predicated region
  $region14: #{block1_forward.1} parent=0 // pred_check
    _
  $region15: #{block1_forward.1} parent=0 // pred_check_branch
    %365 = sbr.rel (0) target = $region17
  $region16: #{block1_forward.1} parent=0 // pred_region
    _
  $region17: #{block1_forward.1} parent=0 // pred_fallthru
    _
  // Predicated region
  $region18: #{block1_forward.1} parent=0 // pred_check
    _
  $region19: #{block1_forward.1} parent=0 // pred_check_branch
    %367 = sbr.rel (0) target = $region21
  $region20: #{block1_forward.1} parent=0 // pred_region
    _
  $region21: #{block1_forward.1} parent=0 // pred_fallthru
    _

</llo_original>
